<compile_context>
chip_gen: v7x
topology: tpu7x:2x2x1
jax: 0.10.0
libtpu: 0.0.40
codegen_flags: <defaults>
</compile_context>

<pallas_src>
import functools
import math

import jax
import jax.numpy as jnp
import numpy as np
from jax.experimental import pallas as pl
from jax.experimental.pallas import tpu as pltpu


def downsample_kernel(x_ref, w_ref, b_ref, out_ref, *, out_h, out_w):
    """One batch image per grid step.

    x_ref:   (1, 2, Hh, 2, Wh, Cin)  f32, phase-split padded NHWC input
             x_ref[0, ph, i, pw, j, c] == x_padded[2*i + ph, 2*j + pw, c]
    w_ref:   (9, Cin, Cout)          bf16, tap-major weights (tap = ki*3 + kj)
    b_ref:   (1, Cout)               f32 bias
    out_ref: (1, out_h*out_w, Cout)  f32 output, row index = ho*out_w + wo
    """
    cin = w_ref.shape[1]
    cout = w_ref.shape[2]
    acc = jnp.zeros((out_h * out_w, cout), jnp.float32)
    for ki in range(3):
        ph, i0 = ki % 2, ki // 2
        for kj in range(3):
            pw, j0 = kj % 2, kj // 2
            # Contiguous window thanks to the even/odd phase split: output pixel
            # (ho, wo) for tap (ki, kj) reads padded (2*ho+ki, 2*wo+kj).
            patch = x_ref[0, ph, pl.ds(i0, out_h), pw, pl.ds(j0, out_w), :]
            patch2d = patch.reshape(out_h * out_w, cin).astype(jnp.bfloat16)
            acc = acc + jnp.dot(
                patch2d, w_ref[ki * 3 + kj], preferred_element_type=jnp.float32
            )
    out_ref[0] = (acc + b_ref[...]).astype(out_ref.dtype)


@jax.jit
def downsample_forward(x, weight, bias):
    """x: (B, C, H, W) f32; weight: (C, C, 3, 3) PyTorch OIHW; bias: (C,)."""
    B, C, H, W = x.shape
    Ho = (H - 1) // 2 + 1
    Wo = (W - 1) // 2 + 1
    Hp, Wp = H + 2, W + 2                    # conv padding = 1 on each side
    Hh, Wh = (Hp + 1) // 2, (Wp + 1) // 2    # even/odd phase extents

    # NCHW -> NHWC, zero pad (1 on top/left; bottom/right padded up to an even
    # extent so the phase split is a pure reshape).
    x_nhwc = jnp.transpose(x, (0, 2, 3, 1))
    x_pad = jnp.pad(
        x_nhwc, ((0, 0), (1, 2 * Hh - Hp + 1), (1, 2 * Wh - Wp + 1), (0, 0))
    )
    # (B, 2*Hh, 2*Wh, C) -> (B, 2, Hh, 2, Wh, C)
    x_split = x_pad.reshape(B, Hh, 2, Wh, 2, C).transpose(0, 2, 1, 4, 3, 5)
    # TODO(synk): activations are DMA'd as f32 and cast to bf16 in-kernel; storing
    # x_split as bf16 would halve activation DMA bytes but needs a bf16-safe
    # (Ho, Wo, C) -> (Ho*Wo, C) relayout; kept f32 for lowering robustness.

    # OIHW -> (tap, Cin, Cout), tap = ki*3 + kj; bf16 for the MXU-native path.
    w_taps = jnp.transpose(weight, (2, 3, 1, 0)).reshape(9, C, C).astype(jnp.bfloat16)
    b2d = bias.reshape(1, C).astype(jnp.float32)

    flops = 2 * B * Ho * Wo * 9 * C * C
    bytes_accessed = (
        x_split.size * 4 + w_taps.size * 2 + b2d.size * 4 + B * Ho * Wo * C * 4
    )

    kernel = functools.partial(downsample_kernel, out_h=Ho, out_w=Wo)
    out = pl.pallas_call(
        kernel,
        out_shape=jax.ShapeDtypeStruct((B, Ho * Wo, C), jnp.float32),
        grid_spec=pltpu.PrefetchScalarGridSpec(
            num_scalar_prefetch=0,
            grid=(B,),
            in_specs=[
                pl.BlockSpec((1, 2, Hh, 2, Wh, C), lambda b: (b, 0, 0, 0, 0, 0)),
                pl.BlockSpec((9, C, C), lambda b: (0, 0, 0)),   # weights resident
                pl.BlockSpec((1, C), lambda b: (0, 0)),          # bias resident
            ],
            out_specs=pl.BlockSpec((1, Ho * Wo, C), lambda b: (b, 0, 0)),
        ),
        compiler_params=pltpu.CompilerParams(dimension_semantics=("parallel",)),
        cost_estimate=pl.CostEstimate(
            flops=flops, transcendentals=0, bytes_accessed=bytes_accessed
        ),
    )(x_split, w_taps, b2d)

    # (B, Ho*Wo, C) -> (B, C, Ho, Wo)
    return out.reshape(B, Ho, Wo, C).transpose(0, 3, 1, 2)


def reference_forward(x, weight, bias):
    """Pure-JAX reference matching the kernel numerics (bf16 operands, f32 acc)."""
    xb = x.astype(jnp.bfloat16).astype(jnp.float32)
    wb = weight.astype(jnp.bfloat16).astype(jnp.float32)
    out = jax.lax.conv_general_dilated(
        xb,
        wb,
        window_strides=(2, 2),
        padding=((1, 1), (1, 1)),
        dimension_numbers=("NCHW", "OIHW", "NCHW"),
        precision=jax.lax.Precision.HIGHEST,
    )
    return out + bias.reshape(1, -1, 1, 1)


if __name__ == "__main__":
    key = jax.random.PRNGKey(0)
    k_x, k_w = jax.random.split(key)

    B, C, H, W = 2, 4, 16, 16
    x = jax.random.normal(k_x, (B, C, H, W), jnp.float32)

    # xavier_uniform_ for the conv weight, zeros_ for the bias (per initialize()).
    fan = C * 3 * 3
    limit = math.sqrt(6.0 / (fan + fan))
    weight = jax.random.uniform(k_w, (C, C, 3, 3), jnp.float32, -limit, limit)
    bias = jnp.zeros((C,), jnp.float32)

    out = downsample_forward(x, weight, bias)
    out = jax.block_until_ready(out)

    ref = reference_forward(x, weight, bias)
    assert out.shape == (B, C, (H - 1) // 2 + 1, (W - 1) // 2 + 1)
    np.testing.assert_allclose(np.asarray(out), np.asarray(ref), rtol=1e-3, atol=1e-3)

    print("KERNEL_OK")
</pallas_src>

<mosaic_0001>
module attributes {stable_mosaic.version = 11 : i64} {
  func.func @downsample_kernel(%arg0: i32, %arg1: memref<1x2x9x2x9x4xf32, #tpu.memory_space<vmem>>, %arg2: memref<9x4x4xbf16, #tpu.memory_space<vmem>>, %arg3: memref<1x4xf32, #tpu.memory_space<vmem>>, %arg4: memref<1x64x4xf32, #tpu.memory_space<vmem>>) attributes {dimension_semantics = [#tpu.dimension_semantics<parallel>], iteration_bounds = array<i64: 2>, scalar_prefetch = 0 : i64, scratch_operands = 0 : i64, tpu.core_type = #tpu.core_type<tc>, window_params = [{transform_indices = @transform_0, window_bounds = array<i64: 1, 2, 9, 2, 9, 4>}, {pipeline_mode = #tpu.pipeline_mode<synchronous>, transform_indices = @transform_1, window_bounds = array<i64: 9, 4, 4>}, {pipeline_mode = #tpu.pipeline_mode<synchronous>, transform_indices = @transform_2, window_bounds = array<i64: 1, 4>}, {transform_indices = @transform_3, window_bounds = array<i64: 1, 64, 4>}]} {
    %cst = arith.constant 0.000000e+00 : f32
    %0 = vector.broadcast %cst : f32 to vector<64x4xf32>
    %c0 = arith.constant 0 : index
    %c0_0 = arith.constant 0 : index
    %c0_1 = arith.constant 0 : index
    %c0_2 = arith.constant 0 : index
    %c0_3 = arith.constant 0 : index
    %c0_4 = arith.constant 0 : index
    %1 = vector.load %arg1[%c0, %c0_0, %c0_1, %c0_2, %c0_3, %c0_4] : memref<1x2x9x2x9x4xf32, #tpu.memory_space<vmem>>, vector<1x1x8x1x8x4xf32>
    %2 = vector.shape_cast %1 : vector<1x1x8x1x8x4xf32> to vector<8x8x4xf32>
    %3 = vector.shape_cast %2 : vector<8x8x4xf32> to vector<64x4xf32>
    %4 = arith.truncf %3 : vector<64x4xf32> to vector<64x4xbf16>
    %c0_5 = arith.constant 0 : index
    %c0_6 = arith.constant 0 : index
    %c0_7 = arith.constant 0 : index
    %5 = vector.load %arg2[%c0_5, %c0_6, %c0_7] : memref<9x4x4xbf16, #tpu.memory_space<vmem>>, vector<1x4x4xbf16>
    %6 = vector.shape_cast %5 : vector<1x4x4xbf16> to vector<4x4xbf16>
    %cst_8 = arith.constant dense<0.000000e+00> : vector<64x4xf32>
    %7 = tpu.matmul %4, %6, %cst_8 {dimension_numbers = #tpu.dot_dimension_numbers<[1], [0], [0], [1], [0, 0, 1, 1], [], []>} : vector<64x4xbf16>, vector<4x4xbf16>, vector<64x4xf32> -> vector<64x4xf32>
    %8 = arith.addf %0, %7 : vector<64x4xf32>
    %c0_9 = arith.constant 0 : index
    %c0_10 = arith.constant 0 : index
    %c0_11 = arith.constant 0 : index
    %c1 = arith.constant 1 : index
    %c0_12 = arith.constant 0 : index
    %c0_13 = arith.constant 0 : index
    %9 = vector.load %arg1[%c0_9, %c0_10, %c0_11, %c1, %c0_12, %c0_13] : memref<1x2x9x2x9x4xf32, #tpu.memory_space<vmem>>, vector<1x1x8x1x8x4xf32>
    %10 = vector.shape_cast %9 : vector<1x1x8x1x8x4xf32> to vector<8x8x4xf32>
    %11 = vector.shape_cast %10 : vector<8x8x4xf32> to vector<64x4xf32>
    %12 = arith.truncf %11 : vector<64x4xf32> to vector<64x4xbf16>
    %c1_14 = arith.constant 1 : index
    %c0_15 = arith.constant 0 : index
    %c0_16 = arith.constant 0 : index
    %13 = vector.load %arg2[%c1_14, %c0_15, %c0_16] : memref<9x4x4xbf16, #tpu.memory_space<vmem>>, vector<1x4x4xbf16>
    %14 = vector.shape_cast %13 : vector<1x4x4xbf16> to vector<4x4xbf16>
    %cst_17 = arith.constant dense<0.000000e+00> : vector<64x4xf32>
    %15 = tpu.matmul %12, %14, %cst_17 {dimension_numbers = #tpu.dot_dimension_numbers<[1], [0], [0], [1], [0, 0, 1, 1], [], []>} : vector<64x4xbf16>, vector<4x4xbf16>, vector<64x4xf32> -> vector<64x4xf32>
    %16 = arith.addf %8, %15 : vector<64x4xf32>
    %c0_18 = arith.constant 0 : index
    %c0_19 = arith.constant 0 : index
    %c0_20 = arith.constant 0 : index
    %c0_21 = arith.constant 0 : index
    %c1_22 = arith.constant 1 : index
    %c0_23 = arith.constant 0 : index
    %17 = vector.load %arg1[%c0_18, %c0_19, %c0_20, %c0_21, %c1_22, %c0_23] : memref<1x2x9x2x9x4xf32, #tpu.memory_space<vmem>>, vector<1x1x8x1x8x4xf32>
    %18 = vector.shape_cast %17 : vector<1x1x8x1x8x4xf32> to vector<8x8x4xf32>
    %19 = vector.shape_cast %18 : vector<8x8x4xf32> to vector<64x4xf32>
    %20 = arith.truncf %19 : vector<64x4xf32> to vector<64x4xbf16>
    %c2 = arith.constant 2 : index
    %c0_24 = arith.constant 0 : index
    %c0_25 = arith.constant 0 : index
    %21 = vector.load %arg2[%c2, %c0_24, %c0_25] : memref<9x4x4xbf16, #tpu.memory_space<vmem>>, vector<1x4x4xbf16>
    %22 = vector.shape_cast %21 : vector<1x4x4xbf16> to vector<4x4xbf16>
    %cst_26 = arith.constant dense<0.000000e+00> : vector<64x4xf32>
    %23 = tpu.matmul %20, %22, %cst_26 {dimension_numbers = #tpu.dot_dimension_numbers<[1], [0], [0], [1], [0, 0, 1, 1], [], []>} : vector<64x4xbf16>, vector<4x4xbf16>, vector<64x4xf32> -> vector<64x4xf32>
    %24 = arith.addf %16, %23 : vector<64x4xf32>
    %c0_27 = arith.constant 0 : index
    %c1_28 = arith.constant 1 : index
    %c0_29 = arith.constant 0 : index
    %c0_30 = arith.constant 0 : index
    %c0_31 = arith.constant 0 : index
    %c0_32 = arith.constant 0 : index
    %25 = vector.load %arg1[%c0_27, %c1_28, %c0_29, %c0_30, %c0_31, %c0_32] : memref<1x2x9x2x9x4xf32, #tpu.memory_space<vmem>>, vector<1x1x8x1x8x4xf32>
    %26 = vector.shape_cast %25 : vector<1x1x8x1x8x4xf32> to vector<8x8x4xf32>
    %27 = vector.shape_cast %26 : vector<8x8x4xf32> to vector<64x4xf32>
    %28 = arith.truncf %27 : vector<64x4xf32> to vector<64x4xbf16>
    %c3 = arith.constant 3 : index
    %c0_33 = arith.constant 0 : index
    %c0_34 = arith.constant 0 : index
    %29 = vector.load %arg2[%c3, %c0_33, %c0_34] : memref<9x4x4xbf16, #tpu.memory_space<vmem>>, vector<1x4x4xbf16>
    %30 = vector.shape_cast %29 : vector<1x4x4xbf16> to vector<4x4xbf16>
    %cst_35 = arith.constant dense<0.000000e+00> : vector<64x4xf32>
    %31 = tpu.matmul %28, %30, %cst_35 {dimension_numbers = #tpu.dot_dimension_numbers<[1], [0], [0], [1], [0, 0, 1, 1], [], []>} : vector<64x4xbf16>, vector<4x4xbf16>, vector<64x4xf32> -> vector<64x4xf32>
    %32 = arith.addf %24, %31 : vector<64x4xf32>
    %c0_36 = arith.constant 0 : index
    %c1_37 = arith.constant 1 : index
    %c0_38 = arith.constant 0 : index
    %c1_39 = arith.constant 1 : index
    %c0_40 = arith.constant 0 : index
    %c0_41 = arith.constant 0 : index
    %33 = vector.load %arg1[%c0_36, %c1_37, %c0_38, %c1_39, %c0_40, %c0_41] : memref<1x2x9x2x9x4xf32, #tpu.memory_space<vmem>>, vector<1x1x8x1x8x4xf32>
    %34 = vector.shape_cast %33 : vector<1x1x8x1x8x4xf32> to vector<8x8x4xf32>
    %35 = vector.shape_cast %34 : vector<8x8x4xf32> to vector<64x4xf32>
    %36 = arith.truncf %35 : vector<64x4xf32> to vector<64x4xbf16>
    %c4 = arith.constant 4 : index
    %c0_42 = arith.constant 0 : index
    %c0_43 = arith.constant 0 : index
    %37 = vector.load %arg2[%c4, %c0_42, %c0_43] : memref<9x4x4xbf16, #tpu.memory_space<vmem>>, vector<1x4x4xbf16>
    %38 = vector.shape_cast %37 : vector<1x4x4xbf16> to vector<4x4xbf16>
    %cst_44 = arith.constant dense<0.000000e+00> : vector<64x4xf32>
    %39 = tpu.matmul %36, %38, %cst_44 {dimension_numbers = #tpu.dot_dimension_numbers<[1], [0], [0], [1], [0, 0, 1, 1], [], []>} : vector<64x4xbf16>, vector<4x4xbf16>, vector<64x4xf32> -> vector<64x4xf32>
    %40 = arith.addf %32, %39 : vector<64x4xf32>
    %c0_45 = arith.constant 0 : index
    %c1_46 = arith.constant 1 : index
    %c0_47 = arith.constant 0 : index
    %c0_48 = arith.constant 0 : index
    %c1_49 = arith.constant 1 : index
    %c0_50 = arith.constant 0 : index
    %41 = vector.load %arg1[%c0_45, %c1_46, %c0_47, %c0_48, %c1_49, %c0_50] : memref<1x2x9x2x9x4xf32, #tpu.memory_space<vmem>>, vector<1x1x8x1x8x4xf32>
    %42 = vector.shape_cast %41 : vector<1x1x8x1x8x4xf32> to vector<8x8x4xf32>
    %43 = vector.shape_cast %42 : vector<8x8x4xf32> to vector<64x4xf32>
    %44 = arith.truncf %43 : vector<64x4xf32> to vector<64x4xbf16>
    %c5 = arith.constant 5 : index
    %c0_51 = arith.constant 0 : index
    %c0_52 = arith.constant 0 : index
    %45 = vector.load %arg2[%c5, %c0_51, %c0_52] : memref<9x4x4xbf16, #tpu.memory_space<vmem>>, vector<1x4x4xbf16>
    %46 = vector.shape_cast %45 : vector<1x4x4xbf16> to vector<4x4xbf16>
    %cst_53 = arith.constant dense<0.000000e+00> : vector<64x4xf32>
    %47 = tpu.matmul %44, %46, %cst_53 {dimension_numbers = #tpu.dot_dimension_numbers<[1], [0], [0], [1], [0, 0, 1, 1], [], []>} : vector<64x4xbf16>, vector<4x4xbf16>, vector<64x4xf32> -> vector<64x4xf32>
    %48 = arith.addf %40, %47 : vector<64x4xf32>
    %c0_54 = arith.constant 0 : index
    %c0_55 = arith.constant 0 : index
    %c1_56 = arith.constant 1 : index
    %c0_57 = arith.constant 0 : index
    %c0_58 = arith.constant 0 : index
    %c0_59 = arith.constant 0 : index
    %49 = vector.load %arg1[%c0_54, %c0_55, %c1_56, %c0_57, %c0_58, %c0_59] : memref<1x2x9x2x9x4xf32, #tpu.memory_space<vmem>>, vector<1x1x8x1x8x4xf32>
    %50 = vector.shape_cast %49 : vector<1x1x8x1x8x4xf32> to vector<8x8x4xf32>
    %51 = vector.shape_cast %50 : vector<8x8x4xf32> to vector<64x4xf32>
    %52 = arith.truncf %51 : vector<64x4xf32> to vector<64x4xbf16>
    %c6 = arith.constant 6 : index
    %c0_60 = arith.constant 0 : index
    %c0_61 = arith.constant 0 : index
    %53 = vector.load %arg2[%c6, %c0_60, %c0_61] : memref<9x4x4xbf16, #tpu.memory_space<vmem>>, vector<1x4x4xbf16>
    %54 = vector.shape_cast %53 : vector<1x4x4xbf16> to vector<4x4xbf16>
    %cst_62 = arith.constant dense<0.000000e+00> : vector<64x4xf32>
    %55 = tpu.matmul %52, %54, %cst_62 {dimension_numbers = #tpu.dot_dimension_numbers<[1], [0], [0], [1], [0, 0, 1, 1], [], []>} : vector<64x4xbf16>, vector<4x4xbf16>, vector<64x4xf32> -> vector<64x4xf32>
    %56 = arith.addf %48, %55 : vector<64x4xf32>
    %c0_63 = arith.constant 0 : index
    %c0_64 = arith.constant 0 : index
    %c1_65 = arith.constant 1 : index
    %c1_66 = arith.constant 1 : index
    %c0_67 = arith.constant 0 : index
    %c0_68 = arith.constant 0 : index
    %57 = vector.load %arg1[%c0_63, %c0_64, %c1_65, %c1_66, %c0_67, %c0_68] : memref<1x2x9x2x9x4xf32, #tpu.memory_space<vmem>>, vector<1x1x8x1x8x4xf32>
    %58 = vector.shape_cast %57 : vector<1x1x8x1x8x4xf32> to vector<8x8x4xf32>
    %59 = vector.shape_cast %58 : vector<8x8x4xf32> to vector<64x4xf32>
    %60 = arith.truncf %59 : vector<64x4xf32> to vector<64x4xbf16>
    %c7 = arith.constant 7 : index
    %c0_69 = arith.constant 0 : index
    %c0_70 = arith.constant 0 : index
    %61 = vector.load %arg2[%c7, %c0_69, %c0_70] : memref<9x4x4xbf16, #tpu.memory_space<vmem>>, vector<1x4x4xbf16>
    %62 = vector.shape_cast %61 : vector<1x4x4xbf16> to vector<4x4xbf16>
    %cst_71 = arith.constant dense<0.000000e+00> : vector<64x4xf32>
    %63 = tpu.matmul %60, %62, %cst_71 {dimension_numbers = #tpu.dot_dimension_numbers<[1], [0], [0], [1], [0, 0, 1, 1], [], []>} : vector<64x4xbf16>, vector<4x4xbf16>, vector<64x4xf32> -> vector<64x4xf32>
    %64 = arith.addf %56, %63 : vector<64x4xf32>
    %c0_72 = arith.constant 0 : index
    %c0_73 = arith.constant 0 : index
    %c1_74 = arith.constant 1 : index
    %c0_75 = arith.constant 0 : index
    %c1_76 = arith.constant 1 : index
    %c0_77 = arith.constant 0 : index
    %65 = vector.load %arg1[%c0_72, %c0_73, %c1_74, %c0_75, %c1_76, %c0_77] : memref<1x2x9x2x9x4xf32, #tpu.memory_space<vmem>>, vector<1x1x8x1x8x4xf32>
    %66 = vector.shape_cast %65 : vector<1x1x8x1x8x4xf32> to vector<8x8x4xf32>
    %67 = vector.shape_cast %66 : vector<8x8x4xf32> to vector<64x4xf32>
    %68 = arith.truncf %67 : vector<64x4xf32> to vector<64x4xbf16>
    %c8 = arith.constant 8 : index
    %c0_78 = arith.constant 0 : index
    %c0_79 = arith.constant 0 : index
    %69 = vector.load %arg2[%c8, %c0_78, %c0_79] : memref<9x4x4xbf16, #tpu.memory_space<vmem>>, vector<1x4x4xbf16>
    %70 = vector.shape_cast %69 : vector<1x4x4xbf16> to vector<4x4xbf16>
    %cst_80 = arith.constant dense<0.000000e+00> : vector<64x4xf32>
    %71 = tpu.matmul %68, %70, %cst_80 {dimension_numbers = #tpu.dot_dimension_numbers<[1], [0], [0], [1], [0, 0, 1, 1], [], []>} : vector<64x4xbf16>, vector<4x4xbf16>, vector<64x4xf32> -> vector<64x4xf32>
    %72 = arith.addf %64, %71 : vector<64x4xf32>
    %c0_81 = arith.constant 0 : index
    %c0_82 = arith.constant 0 : index
    %73 = vector.load %arg3[%c0_81, %c0_82] : memref<1x4xf32, #tpu.memory_space<vmem>>, vector<1x4xf32>
    %74 = vector.broadcast %73 : vector<1x4xf32> to vector<64x4xf32>
    %75 = arith.addf %72, %74 : vector<64x4xf32>
    %c0_83 = arith.constant 0 : index
    %c0_84 = arith.constant 0 : index
    %c0_85 = arith.constant 0 : index
    %76 = vector.load %arg4[%c0_83, %c0_84, %c0_85] : memref<1x64x4xf32, #tpu.memory_space<vmem>>, vector<1x64x4xf32>
    %77 = vector.shape_cast %76 : vector<1x64x4xf32> to vector<64x4xf32>
    %78 = vector.shape_cast %75 : vector<64x4xf32> to vector<1x64x4xf32>
    tpu.vector_store %arg4[%c0_83, %c0_84, %c0_85], %78 {strides = array<i32>} : memref<1x64x4xf32, #tpu.memory_space<vmem>>, vector<1x64x4xf32>,
    return
  }
  func.func @transform_0(%arg0: i32) -> (i32, i32, i32, i32, i32, i32) {
    %c0_i32 = arith.constant 0 : i32
    %c0_i32_0 = arith.constant 0 : i32
    %c0_i32_1 = arith.constant 0 : i32
    %c0_i32_2 = arith.constant 0 : i32
    %c0_i32_3 = arith.constant 0 : i32
    %c0_i32_4 = arith.constant 0 : i32
    return %arg0, %c0_i32, %c0_i32_0, %c0_i32_1, %c0_i32_2, %c0_i32_3 : i32, i32, i32, i32, i32, i32
  }
  func.func @transform_1(%arg0: i32) -> (i32, i32, i32) {
    %c0_i32 = arith.constant 0 : i32
    %c0_i32_0 = arith.constant 0 : i32
    %c0_i32_1 = arith.constant 0 : i32
    %c0_i32_2 = arith.constant 0 : i32
    return %c0_i32, %c0_i32_0, %c0_i32_1 : i32, i32, i32
  }
  func.func @transform_2(%arg0: i32) -> (i32, i32) {
    %c0_i32 = arith.constant 0 : i32
    %c0_i32_0 = arith.constant 0 : i32
    %c0_i32_1 = arith.constant 0 : i32
    return %c0_i32, %c0_i32_0 : i32, i32
  }
  func.func @transform_3(%arg0: i32) -> (i32, i32, i32) {
    %c0_i32 = arith.constant 0 : i32
    %c0_i32_0 = arith.constant 0 : i32
    %c0_i32_1 = arith.constant 0 : i32
    return %arg0, %c0_i32, %c0_i32_0 : i32, i32, i32
  }
}

</mosaic_0001>

<llo_original>
// kernel: downsample_forward.1
$region0: #{downsample_forward.1}
  #allocation0 [shape = 'u32[]', space=smem, size = 0x4, offset = 0x4, fixed_abs, tag = 'smem constant byte address 0x4 - core index']
  #allocation1 [shape = 'u32[144,128]{1,0:T(1,128)}', space=vmem, size = 0x12000, scoped, tag = 'internal scratch']
  %s0 = inlined_call_operand.vmem [shape: f32[2,2,9,2,9,4], index: 0, kind: input, shape index: {}]
  %s1 = inlined_call_operand.vmem [shape: bf16[9,4,4], index: 1, kind: input, shape index: {}]
  %s2 = inlined_call_operand.vmem [shape: f32[1,4], index: 2, kind: input, shape index: {}]
  %s3 = inlined_call_operand.vmem [shape: f32[2,64,4], index: 3, kind: output, shape index: {}]
  %s4 = sld [smem:[#allocation0]]
  $region45: #{downsample_forward.1} parent=0
    _
  %s6 = ssub.s32 1, %s4
  %s7 = scalar_select 0, %s6, %s4
  loop: start=0, step=1, limit=4
  $region2: #{downsample_forward.1} parent=0 // loop_pre_header
    _
  $region3: #{downsample_forward.1} parent=0 // loop_header
    %s9 = sphi 0, %s13
    %p10 = scmp.ge.s32.totalorder %s9, 4
    %s19 = sphi 0, %s21
    %s22 = sphi 0, %s19
    %s23 = sphi 0, %s22
    %s39 = sphi 0, %s23
    %s43 = sphi 0, %s43
    %s45 = sphi 0, %s43
    %s46 = sphi 0, %s45
    %s60 = sphi 0, %s46
    %s64 = sphi 0, %s64
    %s66 = sphi 0, %s64
    %s67 = sphi 0, %s66
    %s81 = sphi 0, %s67
    %s87 = sphi 0, %s89
    %s90 = sphi 0, %s87
    %s91 = sphi 0, %s90
    %s107 = sphi 0, %s91
  $region4: #{downsample_forward.1} parent=0 // loop_header_branch
    %12 = sbr.rel (%p10) target = $region8
  $region5: #{downsample_forward.1} parent=0 // loop_body
    %s14 = ssub.s32 %s9, 1
    %s15 = ssub.s32 %s9, 2
    %s16 = sadd.s32 %s9, 1
    %s17 = ssub.s32 %s9, %s16
    %p18 = scmp.eq.s32.totalorder %s17, 0
    %s20 = sadd.s32 %s19, 1
    %s21 = scalar_select %p18, %s19, %s20
    %p24 = pneg %p18
    %p25 = scmp.eq.s32.totalorder %s9, 1
    %p26 = por %p24, %p25
    %p27 = scmp.ne.s32.totalorder %s19, %s22
    %p28 = scmp.eq.s32.totalorder %s9, 0
    %p29 = por %p27, %p28
    %p30 = scmp.ne.s32.totalorder %s19, %s22
    %p31 = scmp.eq.s32.totalorder %s14, 1
    %p32 = por %p30, %p31
    %p33 = scmp.ne.s32.totalorder %s22, %s23
    %p34 = scmp.eq.s32.totalorder %s14, 0
    %p35 = por %p33, %p34
    %p36 = scmp.ne.s32.totalorder %s22, %s23
    %p37 = scmp.eq.s32.totalorder %s15, 1
    %p38 = por %p36, %p37
    %p40 = scmp.ne.s32.totalorder %s23, %s39
    %p41 = scmp.eq.s32.totalorder %s15, 0
    %p42 = por %p40, %p41
    %s44 = sadd.s32 %s43, 1
    %p47 = scmp.eq.s32.totalorder %s9, 1
    %p48 = scmp.ne.s32.totalorder %s43, %s45
    %p49 = scmp.eq.s32.totalorder %s9, 0
    %p50 = por %p48, %p49
    %p51 = scmp.ne.s32.totalorder %s43, %s45
    %p52 = scmp.eq.s32.totalorder %s14, 1
    %p53 = por %p51, %p52
    %p54 = scmp.ne.s32.totalorder %s45, %s46
    %p55 = scmp.eq.s32.totalorder %s14, 0
    %p56 = por %p54, %p55
    %p57 = scmp.ne.s32.totalorder %s45, %s46
    %p58 = scmp.eq.s32.totalorder %s15, 1
    %p59 = por %p57, %p58
    %p61 = scmp.ne.s32.totalorder %s46, %s60
    %p62 = scmp.eq.s32.totalorder %s15, 0
    %p63 = por %p61, %p62
    %s65 = sadd.s32 %s64, 1
    %p68 = scmp.eq.s32.totalorder %s9, 1
    %p69 = scmp.ne.s32.totalorder %s64, %s66
    %p70 = scmp.eq.s32.totalorder %s9, 0
    %p71 = por %p69, %p70
    %p72 = scmp.ne.s32.totalorder %s64, %s66
    %p73 = scmp.eq.s32.totalorder %s14, 1
    %p74 = por %p72, %p73
    %p75 = scmp.ne.s32.totalorder %s66, %s67
    %p76 = scmp.eq.s32.totalorder %s14, 0
    %p77 = por %p75, %p76
    %p78 = scmp.ne.s32.totalorder %s66, %s67
    %p79 = scmp.eq.s32.totalorder %s15, 1
    %p80 = por %p78, %p79
    %p82 = scmp.ne.s32.totalorder %s67, %s81
    %p83 = scmp.eq.s32.totalorder %s15, 0
    %p84 = por %p82, %p83
    %s85 = ssub.s32 %s9, %s16
    %p86 = scmp.eq.s32.totalorder %s85, 0
    %s88 = sadd.s32 %s87, 1
    %s89 = scalar_select %p86, %s87, %s88
    %p92 = pneg %p86
    %p93 = scmp.eq.s32.totalorder %s9, 1
    %p94 = por %p92, %p93
    %p95 = scmp.ne.s32.totalorder %s87, %s90
    %p96 = scmp.eq.s32.totalorder %s9, 0
    %p97 = por %p95, %p96
    %p98 = scmp.ne.s32.totalorder %s87, %s90
    %p99 = scmp.eq.s32.totalorder %s14, 1
    %p100 = por %p98, %p99
    %p101 = scmp.ne.s32.totalorder %s90, %s91
    %p102 = scmp.eq.s32.totalorder %s14, 0
    %p103 = por %p101, %p102
    %p104 = scmp.ne.s32.totalorder %s90, %s91
    %p105 = scmp.eq.s32.totalorder %s15, 1
    %p106 = por %p104, %p105
    %p108 = scmp.ne.s32.totalorder %s91, %s107
    %p109 = scmp.eq.s32.totalorder %s15, 0
    %p110 = por %p108, %p109
    %p111 = scmp.le.s32.totalorder 1, %s9
    %p112 = scmp.lt.s32.totalorder %s9, 3
    %p113 = pnand %p111, %p112
    %p114 = pneg %p113
    // Predicated region
    $region9: #{downsample_forward.1} parent=5 // pred_check
      _
    $region10: #{downsample_forward.1} parent=5 // pred_check_branch
      %116 = sbr.rel (%p113) target = $region12
    $region11: #{downsample_forward.1} parent=5 // pred_region
      %s117 = ssub.s32 %s9, 1
      // Predicated region
      $region13: #{downsample_forward.1} parent=11 // pred_check
        %p118 = pneg %p56
      $region14: #{downsample_forward.1} parent=11 // pred_check_branch
        %120 = sbr.rel (%p118) target = $region16
      $region15: #{downsample_forward.1} parent=11 // pred_region
        _
      $region16: #{downsample_forward.1} parent=11 // pred_fallthru
        _
      // Predicated region
      $region17: #{downsample_forward.1} parent=11 // pred_check
        %p121 = pneg %p77
      $region18: #{downsample_forward.1} parent=11 // pred_check_branch
        %123 = sbr.rel (%p121) target = $region20
      $region19: #{downsample_forward.1} parent=11 // pred_region
        _
      $region20: #{downsample_forward.1} parent=11 // pred_fallthru
        _
    $region12: #{downsample_forward.1} parent=5 // pred_fallthru
      _
    %p124 = scmp.lt.s32.totalorder %s9, 2
    // Predicated region
    $region21: #{downsample_forward.1} parent=5 // pred_check
      %p125 = pneg %p124
    $region22: #{downsample_forward.1} parent=5 // pred_check_branch
      %127 = sbr.rel (%p125) target = $region24
    $region23: #{downsample_forward.1} parent=5 // pred_region
      // Predicated region
      $region25: #{downsample_forward.1} parent=23 // pred_check
        %p128 = pneg %p29
      $region26: #{downsample_forward.1} parent=23 // pred_check_branch
        %130 = sbr.rel (%p128) target = $region28
      $region27: #{downsample_forward.1} parent=23 // pred_region
        %p131 = scmp.lt.s32.totalorder %s9, 1
        %s132 = scalar_select %p131, %s9, 1
        %s133 = smul.addr %s132, 72
        %s134 = smul.addr %s133, 8
        %s135 = scalar_lea.vmem %s0, %s134
      $region28: #{downsample_forward.1} parent=23 // pred_fallthru
        _
    $region24: #{downsample_forward.1} parent=5 // pred_fallthru
      _
    %p136 = scmp.le.s32.totalorder 1, %s9
    %p137 = scmp.lt.s32.totalorder %s9, 3
    %p138 = pnand %p136, %p137
    %p139 = pneg %p138
    // Predicated region
    $region29: #{downsample_forward.1} parent=5 // pred_check
      _
    $region30: #{downsample_forward.1} parent=5 // pred_check_branch
      %141 = sbr.rel (%p138) target = $region32
    $region31: #{downsample_forward.1} parent=5 // pred_region
      %s142 = ssub.s32 %s9, 1
      %p143 = scmp.lt.s32.totalorder %s14, 1
      %s144 = scalar_select %p143, %s14, 1
      %s145 = smul.addr %s144, 72
      %s146 = smul.addr %s145, 8
      %s147 = scalar_lea.vmem %s0, %s146
      %p148 = pneg %p35
      %p149 = pneg %p32
      %p150 = pneg %p56
      %p151 = pneg %p53
      %p152 = pneg %p77
      %p153 = pneg %p74
      %p154 = pneg %p103
      %p155 = pneg %p100
      %p156 = scmp.lt.s32.totalorder %s14, 1
      %s157 = scalar_select %p156, %s14, 1
      %s158 = smul.addr %s157, 8
      %s159 = smul.addr %s158, 8
      %s160 = scalar_lea.vmem %s3, %s159
      %p161 = scmp.lt.s32.totalorder %s14, 1
      %s162 = scalar_select %p161, %s14, 1
      %s163 = smul.addr %s162, 72
      %s164 = smul.addr %s163, 8
      %s165 = scalar_lea.vmem %s0, %s164
      %p166 = scmp.lt.s32.totalorder %s14, 1
      %s167 = scalar_select %p166, %s14, 1
      %s168 = smul.addr %s167, 8
      %s169 = smul.addr %s168, 8
      %s170 = scalar_lea.vmem %s3, %s169
      %v172 = vld [vmem:[%s165] sm:$0xff]
      %v173 = vld [vmem:[%s165 + $0x20] sm:$0xff]
      %v174 = vld [vmem:[%s165 + $0x40] sm:$0xff]
      %v175 = vld [vmem:[%s165 + $0x60] sm:$0xff]
      %v176 = vld [vmem:[%s165 + $0x80] sm:$0xff]
      %v177 = vld [vmem:[%s165 + $0xa0] sm:$0xff]
      %v178 = vld [vmem:[%s165 + $0xc0] sm:$0xff]
      %v179 = vld [vmem:[%s165 + $0xe0] sm:$0xff]
      %v180 = vpack.c.bf16 %v173, %v172
      %v181 = vpack.c.bf16 %v175, %v174
      %v182 = vpack.c.bf16 %v177, %v176
      %v183 = vpack.c.bf16 %v179, %v178
      %v184 = vld [vmem:[%s1] sm:$0x3]
      %s185 = scalar_lea.vmem %s165, 16
      %v186 = vld [vmem:[%s185] sm:$0xff]
      %v187 = vld [vmem:[%s185 + $0x20] sm:$0xff]
      %v188 = vld [vmem:[%s185 + $0x40] sm:$0xff]
      %v189 = vld [vmem:[%s185 + $0x60] sm:$0xff]
      %v190 = vld [vmem:[%s185 + $0x80] sm:$0xff]
      %v191 = vld [vmem:[%s185 + $0xa0] sm:$0xff]
      %v192 = vld [vmem:[%s185 + $0xc0] sm:$0xff]
      %v193 = vld [vmem:[%s185 + $0xe0] sm:$0xff]
      %v194 = vpack.c.bf16 %v187, %v186
      %v195 = vpack.c.bf16 %v189, %v188
      %v196 = vpack.c.bf16 %v191, %v190
      %v197 = vpack.c.bf16 %v193, %v192
      %s198 = scalar_lea.vmem %s1, 2
      %v199 = vld [vmem:[%s198] sm:$0x3]
      %vm200 = vcmask 31744
      %v202 = vsel %vm200, %v194, 0
      %v205 = vsel %vm200, %v195, 0
      %v208 = vsel %vm200, %v196, 0
      %v211 = vsel %vm200, %v197, 0
      %vm213 = vcmask 1041408
      %v215 = vsel %vm213, %v199, 0
      %217 = vmatprep.subr.bf16.mxu0 0
      %218 = vmatpush1.bf16.msra.mxu0 %v215
      %219 = vmatprep.subr.bf16.mxu0 0
      %220 = vmatpush1.bf16.msra.mxu0 0
      %221 = vmatprep.subr.bf16.mxu0 0
      %222 = vmatpush1.bf16.msra.mxu0 0
      %223 = vmatprep.subr.bf16.mxu0 0
      %224 = vmatpush1.bf16.msra.mxu0 0
      %225 = vmatprep.subr.bf16.mxu0 0
      %226 = vmatpush1.bf16.msra.mxu0 0
      %227 = vmatprep.subr.bf16.mxu0 0
      %228 = vmatpush1.bf16.msra.mxu0 0
      %229 = vmatprep.subr.bf16.mxu0 0
      %230 = vmatpush1.bf16.msra.mxu0 0
      %231 = vmatprep.subr.bf16.mxu0 0
      %232 = vmatpush1.bf16.msra.mxu0 0
      %233 = vmatprep.subr.bf16.mxu0 0
      %234 = vmatpush1.bf16.msra.mxu0 0
      %235 = vmatprep.subr.bf16.mxu0 0
      %236 = vmatpush1.bf16.msra.mxu0 0
      %237 = vmatprep.subr.bf16.mxu0 0
      %238 = vmatpush1.bf16.msra.mxu0 0
      %239 = vmatprep.subr.bf16.mxu0 0
      %240 = vmatpush1.bf16.msra.mxu0 0
      %241 = vmatprep.subr.bf16.mxu0 0
      %242 = vmatpush1.bf16.msra.mxu0 0
      %243 = vmatprep.subr.bf16.mxu0 0
      %244 = vmatpush1.bf16.msra.mxu0 0
      %245 = vmatprep.subr.bf16.mxu0 0
      %246 = vmatpush1.bf16.msra.mxu0 0
      %247 = vmatprep.subr.bf16.mxu0 0
      %248 = vmatpush1.bf16.msra.mxu0 0
      %249 = vmatprep.mubr.bf16.mxu0 0
      %250 = vmatmul.mubr.bf16.gmra.mrb[0].mxu0 %v202
      %v251 = vpop.f32.mrb[0].mxu0
      %v252 = vadd.f32 0.0, %v251
      %v253 = vpop.f32.mrb[0].mxu0
      %v254 = vpop.f32.mrb[0].mxu0
      %v255 = vadd.f32 0.0, %v254
      %v256 = vpop.f32.mrb[0].mxu0
      %257 = vmatprep.mubr.bf16.mxu0 0
      %258 = vmatmul.mubr.bf16.gmra.mrb[0].mxu0 %v205
      %v259 = vpop.f32.mrb[0].mxu0
      %v260 = vadd.f32 0.0, %v259
      %v261 = vpop.f32.mrb[0].mxu0
      %v262 = vpop.f32.mrb[0].mxu0
      %v263 = vadd.f32 0.0, %v262
      %v264 = vpop.f32.mrb[0].mxu0
      %265 = vmatprep.mubr.bf16.mxu0 0
      %266 = vmatmul.mubr.bf16.gmra.mrb[0].mxu0 %v208
      %v267 = vpop.f32.mrb[0].mxu0
      %v268 = vadd.f32 0.0, %v267
      %v269 = vpop.f32.mrb[0].mxu0
      %v270 = vpop.f32.mrb[0].mxu0
      %v271 = vadd.f32 0.0, %v270
      %v272 = vpop.f32.mrb[0].mxu0
      %273 = vmatprep.mubr.bf16.mxu0 0
      %274 = vmatmul.mubr.bf16.gmra.mrb[0].mxu0 %v211
      %v275 = vpop.f32.mrb[0].mxu0
      %v276 = vadd.f32 0.0, %v275
      %v277 = vpop.f32.mrb[0].mxu0
      %v278 = vpop.f32.mrb[0].mxu0
      %v279 = vadd.f32 0.0, %v278
      %v280 = vpop.f32.mrb[0].mxu0
      %281 = vdwg.mxu0
      %v283 = vsel %vm200, %v180, 0
      %v286 = vsel %vm200, %v181, 0
      %v289 = vsel %vm200, %v182, 0
      %v292 = vsel %vm200, %v183, 0
      %v295 = vsel %vm213, %v184, 0
      %297 = vmatprep.subr.bf16.mxu0 0
      %298 = vmatpush1.bf16.msra.mxu0 %v295
      %299 = vmatprep.subr.bf16.mxu0 0
      %300 = vmatpush1.bf16.msra.mxu0 0
      %301 = vmatprep.subr.bf16.mxu0 0
      %302 = vmatpush1.bf16.msra.mxu0 0
      %303 = vmatprep.subr.bf16.mxu0 0
      %304 = vmatpush1.bf16.msra.mxu0 0
      %305 = vmatprep.subr.bf16.mxu0 0
      %306 = vmatpush1.bf16.msra.mxu0 0
      %307 = vmatprep.subr.bf16.mxu0 0
      %308 = vmatpush1.bf16.msra.mxu0 0
      %309 = vmatprep.subr.bf16.mxu0 0
      %310 = vmatpush1.bf16.msra.mxu0 0
      %311 = vmatprep.subr.bf16.mxu0 0
      %312 = vmatpush1.bf16.msra.mxu0 0
      %313 = vmatprep.subr.bf16.mxu0 0
      %314 = vmatpush1.bf16.msra.mxu0 0
      %315 = vmatprep.subr.bf16.mxu0 0
      %316 = vmatpush1.bf16.msra.mxu0 0
      %317 = vmatprep.subr.bf16.mxu0 0
      %318 = vmatpush1.bf16.msra.mxu0 0
      %319 = vmatprep.subr.bf16.mxu0 0
      %320 = vmatpush1.bf16.msra.mxu0 0
      %321 = vmatprep.subr.bf16.mxu0 0
      %322 = vmatpush1.bf16.msra.mxu0 0
      %323 = vmatprep.subr.bf16.mxu0 0
      %324 = vmatpush1.bf16.msra.mxu0 0
      %325 = vmatprep.subr.bf16.mxu0 0
      %326 = vmatpush1.bf16.msra.mxu0 0
      %327 = vmatprep.subr.bf16.mxu0 0
      %328 = vmatpush1.bf16.msra.mxu0 0
      %329 = vmatprep.mubr.bf16.mxu0 0
      %330 = vmatmul.mubr.bf16.gmra.mrb[0].mxu0 %v283
      %v331 = vpop.f32.mrb[0].mxu0
      %v332 = vadd.f32 %v252, %v331
      %v333 = vpop.f32.mrb[0].mxu0
      %v334 = vpop.f32.mrb[0].mxu0
      %v335 = vadd.f32 %v255, %v334
      %v336 = vpop.f32.mrb[0].mxu0
      %337 = vmatprep.mubr.bf16.mxu0 0
      %338 = vmatmul.mubr.bf16.gmra.mrb[0].mxu0 %v286
      %v339 = vpop.f32.mrb[0].mxu0
      %v340 = vadd.f32 %v260, %v339
      %v341 = vpop.f32.mrb[0].mxu0
      %v342 = vpop.f32.mrb[0].mxu0
      %v343 = vadd.f32 %v263, %v342
      %v344 = vpop.f32.mrb[0].mxu0
      %345 = vmatprep.mubr.bf16.mxu0 0
      %346 = vmatmul.mubr.bf16.gmra.mrb[0].mxu0 %v289
      %v347 = vpop.f32.mrb[0].mxu0
      %v348 = vadd.f32 %v268, %v347
      %v349 = vpop.f32.mrb[0].mxu0
      %v350 = vpop.f32.mrb[0].mxu0
      %v351 = vadd.f32 %v271, %v350
      %v352 = vpop.f32.mrb[0].mxu0
      %353 = vmatprep.mubr.bf16.mxu0 0
      %354 = vmatmul.mubr.bf16.gmra.mrb[0].mxu0 %v292
      %v355 = vpop.f32.mrb[0].mxu0
      %v356 = vadd.f32 %v276, %v355
      %v357 = vpop.f32.mrb[0].mxu0
      %v358 = vpop.f32.mrb[0].mxu0
      %v359 = vadd.f32 %v279, %v358
      %v360 = vpop.f32.mrb[0].mxu0
      %361 = vdwg.mxu0
      %v362 = vld [vmem:[%s165 + $0x1] sm:$0xff]
      %v363 = vld [vmem:[%s165 + $0x21] sm:$0xff]
      %v364 = vld [vmem:[%s165 + $0x41] sm:$0xff]
      %v365 = vld [vmem:[%s165 + $0x61] sm:$0xff]
      %v366 = vld [vmem:[%s165 + $0x81] sm:$0xff]
      %v367 = vld [vmem:[%s165 + $0xa1] sm:$0xff]
      %v368 = vld [vmem:[%s165 + $0xc1] sm:$0xff]
      %v369 = vld [vmem:[%s165 + $0xe1] sm:$0xff]
      %v370 = vpack.c.bf16 %v363, %v362
      %v371 = vpack.c.bf16 %v365, %v364
      %v372 = vpack.c.bf16 %v367, %v366
      %v373 = vpack.c.bf16 %v369, %v368
      %s374 = scalar_lea.vmem %s1, 4
      %v375 = vld [vmem:[%s374] sm:$0x3]
      %v377 = vsel %vm200, %v370, 0
      %v380 = vsel %vm200, %v371, 0
      %v383 = vsel %vm200, %v372, 0
      %v386 = vsel %vm200, %v373, 0
      %v389 = vsel %vm213, %v375, 0
      %391 = vmatprep.subr.bf16.mxu0 0
      %392 = vmatpush1.bf16.msra.mxu0 %v389
      %393 = vmatprep.subr.bf16.mxu0 0
      %394 = vmatpush1.bf16.msra.mxu0 0
      %395 = vmatprep.subr.bf16.mxu0 0
      %396 = vmatpush1.bf16.msra.mxu0 0
      %397 = vmatprep.subr.bf16.mxu0 0
      %398 = vmatpush1.bf16.msra.mxu0 0
      %399 = vmatprep.subr.bf16.mxu0 0
      %400 = vmatpush1.bf16.msra.mxu0 0
      %401 = vmatprep.subr.bf16.mxu0 0
      %402 = vmatpush1.bf16.msra.mxu0 0
      %403 = vmatprep.subr.bf16.mxu0 0
      %404 = vmatpush1.bf16.msra.mxu0 0
      %405 = vmatprep.subr.bf16.mxu0 0
      %406 = vmatpush1.bf16.msra.mxu0 0
      %407 = vmatprep.subr.bf16.mxu0 0
      %408 = vmatpush1.bf16.msra.mxu0 0
      %409 = vmatprep.subr.bf16.mxu0 0
      %410 = vmatpush1.bf16.msra.mxu0 0
      %411 = vmatprep.subr.bf16.mxu0 0
      %412 = vmatpush1.bf16.msra.mxu0 0
      %413 = vmatprep.subr.bf16.mxu0 0
      %414 = vmatpush1.bf16.msra.mxu0 0
      %415 = vmatprep.subr.bf16.mxu0 0
      %416 = vmatpush1.bf16.msra.mxu0 0
      %417 = vmatprep.subr.bf16.mxu0 0
      %418 = vmatpush1.bf16.msra.mxu0 0
      %419 = vmatprep.subr.bf16.mxu0 0
      %420 = vmatpush1.bf16.msra.mxu0 0
      %421 = vmatprep.subr.bf16.mxu0 0
      %422 = vmatpush1.bf16.msra.mxu0 0
      %423 = vmatprep.mubr.bf16.mxu0 0
      %424 = vmatmul.mubr.bf16.gmra.mrb[0].mxu0 %v377
      %v425 = vpop.f32.mrb[0].mxu0
      %v426 = vadd.f32 0.0, %v425
      %v427 = vpop.f32.mrb[0].mxu0
      %v428 = vpop.f32.mrb[0].mxu0
      %v429 = vadd.f32 0.0, %v428
      %v430 = vpop.f32.mrb[0].mxu0
      %431 = vmatprep.mubr.bf16.mxu0 0
      %432 = vmatmul.mubr.bf16.gmra.mrb[0].mxu0 %v380
      %v433 = vpop.f32.mrb[0].mxu0
      %v434 = vadd.f32 0.0, %v433
      %v435 = vpop.f32.mrb[0].mxu0
      %v436 = vpop.f32.mrb[0].mxu0
      %v437 = vadd.f32 0.0, %v436
      %v438 = vpop.f32.mrb[0].mxu0
      %439 = vmatprep.mubr.bf16.mxu0 0
      %440 = vmatmul.mubr.bf16.gmra.mrb[0].mxu0 %v383
      %v441 = vpop.f32.mrb[0].mxu0
      %v442 = vadd.f32 0.0, %v441
      %v443 = vpop.f32.mrb[0].mxu0
      %v444 = vpop.f32.mrb[0].mxu0
      %v445 = vadd.f32 0.0, %v444
      %v446 = vpop.f32.mrb[0].mxu0
      %447 = vmatprep.mubr.bf16.mxu0 0
      %448 = vmatmul.mubr.bf16.gmra.mrb[0].mxu0 %v386
      %v449 = vpop.f32.mrb[0].mxu0
      %v450 = vadd.f32 0.0, %v449
      %v451 = vpop.f32.mrb[0].mxu0
      %v452 = vpop.f32.mrb[0].mxu0
      %v453 = vadd.f32 0.0, %v452
      %v454 = vpop.f32.mrb[0].mxu0
      %455 = vdwg.mxu0
      %v456 = vadd.f32 %v332, %v426
      %v457 = vadd.f32 %v335, %v429
      %v458 = vadd.f32 %v340, %v434
      %v459 = vadd.f32 %v343, %v437
      %v460 = vadd.f32 %v348, %v442
      %v461 = vadd.f32 %v351, %v445
      %v462 = vadd.f32 %v356, %v450
      %v463 = vadd.f32 %v359, %v453
      %s464 = scalar_lea.vmem %s165, 288
      %v465 = vld [vmem:[%s464] sm:$0xff]
      %v466 = vld [vmem:[%s464 + $0x20] sm:$0xff]
      %v467 = vld [vmem:[%s464 + $0x40] sm:$0xff]
      %v468 = vld [vmem:[%s464 + $0x60] sm:$0xff]
      %v469 = vld [vmem:[%s464 + $0x80] sm:$0xff]
      %v470 = vld [vmem:[%s464 + $0xa0] sm:$0xff]
      %v471 = vld [vmem:[%s464 + $0xc0] sm:$0xff]
      %v472 = vld [vmem:[%s464 + $0xe0] sm:$0xff]
      %v473 = vpack.c.bf16 %v466, %v465
      %v474 = vpack.c.bf16 %v468, %v467
      %v475 = vpack.c.bf16 %v470, %v469
      %v476 = vpack.c.bf16 %v472, %v471
      %s477 = scalar_lea.vmem %s1, 6
      %v478 = vld [vmem:[%s477] sm:$0x3]
      %v480 = vsel %vm200, %v473, 0
      %v483 = vsel %vm200, %v474, 0
      %v486 = vsel %vm200, %v475, 0
      %v489 = vsel %vm200, %v476, 0
      %v492 = vsel %vm213, %v478, 0
      %494 = vmatprep.subr.bf16.mxu0 0
      %495 = vmatpush1.bf16.msra.mxu0 %v492
      %496 = vmatprep.subr.bf16.mxu0 0
      %497 = vmatpush1.bf16.msra.mxu0 0
      %498 = vmatprep.subr.bf16.mxu0 0
      %499 = vmatpush1.bf16.msra.mxu0 0
      %500 = vmatprep.subr.bf16.mxu0 0
      %501 = vmatpush1.bf16.msra.mxu0 0
      %502 = vmatprep.subr.bf16.mxu0 0
      %503 = vmatpush1.bf16.msra.mxu0 0
      %504 = vmatprep.subr.bf16.mxu0 0
      %505 = vmatpush1.bf16.msra.mxu0 0
      %506 = vmatprep.subr.bf16.mxu0 0
      %507 = vmatpush1.bf16.msra.mxu0 0
      %508 = vmatprep.subr.bf16.mxu0 0
      %509 = vmatpush1.bf16.msra.mxu0 0
      %510 = vmatprep.subr.bf16.mxu0 0
      %511 = vmatpush1.bf16.msra.mxu0 0
      %512 = vmatprep.subr.bf16.mxu0 0
      %513 = vmatpush1.bf16.msra.mxu0 0
      %514 = vmatprep.subr.bf16.mxu0 0
      %515 = vmatpush1.bf16.msra.mxu0 0
      %516 = vmatprep.subr.bf16.mxu0 0
      %517 = vmatpush1.bf16.msra.mxu0 0
      %518 = vmatprep.subr.bf16.mxu0 0
      %519 = vmatpush1.bf16.msra.mxu0 0
      %520 = vmatprep.subr.bf16.mxu0 0
      %521 = vmatpush1.bf16.msra.mxu0 0
      %522 = vmatprep.subr.bf16.mxu0 0
      %523 = vmatpush1.bf16.msra.mxu0 0
      %524 = vmatprep.subr.bf16.mxu0 0
      %525 = vmatpush1.bf16.msra.mxu0 0
      %526 = vmatprep.mubr.bf16.mxu0 0
      %527 = vmatmul.mubr.bf16.gmra.mrb[0].mxu0 %v480
      %v528 = vpop.f32.mrb[0].mxu0
      %v529 = vadd.f32 0.0, %v528
      %v530 = vpop.f32.mrb[0].mxu0
      %v531 = vpop.f32.mrb[0].mxu0
      %v532 = vadd.f32 0.0, %v531
      %v533 = vpop.f32.mrb[0].mxu0
      %534 = vmatprep.mubr.bf16.mxu0 0
      %535 = vmatmul.mubr.bf16.gmra.mrb[0].mxu0 %v483
      %v536 = vpop.f32.mrb[0].mxu0
      %v537 = vadd.f32 0.0, %v536
      %v538 = vpop.f32.mrb[0].mxu0
      %v539 = vpop.f32.mrb[0].mxu0
      %v540 = vadd.f32 0.0, %v539
      %v541 = vpop.f32.mrb[0].mxu0
      %542 = vmatprep.mubr.bf16.mxu0 0
      %543 = vmatmul.mubr.bf16.gmra.mrb[0].mxu0 %v486
      %v544 = vpop.f32.mrb[0].mxu0
      %v545 = vadd.f32 0.0, %v544
      %v546 = vpop.f32.mrb[0].mxu0
      %v547 = vpop.f32.mrb[0].mxu0
      %v548 = vadd.f32 0.0, %v547
      %v549 = vpop.f32.mrb[0].mxu0
      %550 = vmatprep.mubr.bf16.mxu0 0
      %551 = vmatmul.mubr.bf16.gmra.mrb[0].mxu0 %v489
      %v552 = vpop.f32.mrb[0].mxu0
      %v553 = vadd.f32 0.0, %v552
      %v554 = vpop.f32.mrb[0].mxu0
      %v555 = vpop.f32.mrb[0].mxu0
      %v556 = vadd.f32 0.0, %v555
      %v557 = vpop.f32.mrb[0].mxu0
      %558 = vdwg.mxu0
      %v559 = vadd.f32 %v456, %v529
      %v560 = vadd.f32 %v457, %v532
      %v561 = vadd.f32 %v458, %v537
      %v562 = vadd.f32 %v459, %v540
      %v563 = vadd.f32 %v460, %v545
      %v564 = vadd.f32 %v461, %v548
      %v565 = vadd.f32 %v462, %v553
      %v566 = vadd.f32 %v463, %v556
      %s567 = scalar_lea.vmem %s165, 304
      %v568 = vld [vmem:[%s567] sm:$0xff]
      %v569 = vld [vmem:[%s567 + $0x20] sm:$0xff]
      %v570 = vld [vmem:[%s567 + $0x40] sm:$0xff]
      %v571 = vld [vmem:[%s567 + $0x60] sm:$0xff]
      %v572 = vld [vmem:[%s567 + $0x80] sm:$0xff]
      %v573 = vld [vmem:[%s567 + $0xa0] sm:$0xff]
      %v574 = vld [vmem:[%s567 + $0xc0] sm:$0xff]
      %v575 = vld [vmem:[%s567 + $0xe0] sm:$0xff]
      %v576 = vpack.c.bf16 %v569, %v568
      %v577 = vpack.c.bf16 %v571, %v570
      %v578 = vpack.c.bf16 %v573, %v572
      %v579 = vpack.c.bf16 %v575, %v574
      %s580 = scalar_lea.vmem %s1, 8
      %v581 = vld [vmem:[%s580] sm:$0x3]
      %v583 = vsel %vm200, %v576, 0
      %v586 = vsel %vm200, %v577, 0
      %v589 = vsel %vm200, %v578, 0
      %v592 = vsel %vm200, %v579, 0
      %v595 = vsel %vm213, %v581, 0
      %597 = vmatprep.subr.bf16.mxu0 0
      %598 = vmatpush1.bf16.msra.mxu0 %v595
      %599 = vmatprep.subr.bf16.mxu0 0
      %600 = vmatpush1.bf16.msra.mxu0 0
      %601 = vmatprep.subr.bf16.mxu0 0
      %602 = vmatpush1.bf16.msra.mxu0 0
      %603 = vmatprep.subr.bf16.mxu0 0
      %604 = vmatpush1.bf16.msra.mxu0 0
      %605 = vmatprep.subr.bf16.mxu0 0
      %606 = vmatpush1.bf16.msra.mxu0 0
      %607 = vmatprep.subr.bf16.mxu0 0
      %608 = vmatpush1.bf16.msra.mxu0 0
      %609 = vmatprep.subr.bf16.mxu0 0
      %610 = vmatpush1.bf16.msra.mxu0 0
      %611 = vmatprep.subr.bf16.mxu0 0
      %612 = vmatpush1.bf16.msra.mxu0 0
      %613 = vmatprep.subr.bf16.mxu0 0
      %614 = vmatpush1.bf16.msra.mxu0 0
      %615 = vmatprep.subr.bf16.mxu0 0
      %616 = vmatpush1.bf16.msra.mxu0 0
      %617 = vmatprep.subr.bf16.mxu0 0
      %618 = vmatpush1.bf16.msra.mxu0 0
      %619 = vmatprep.subr.bf16.mxu0 0
      %620 = vmatpush1.bf16.msra.mxu0 0
      %621 = vmatprep.subr.bf16.mxu0 0
      %622 = vmatpush1.bf16.msra.mxu0 0
      %623 = vmatprep.subr.bf16.mxu0 0
      %624 = vmatpush1.bf16.msra.mxu0 0
      %625 = vmatprep.subr.bf16.mxu0 0
      %626 = vmatpush1.bf16.msra.mxu0 0
      %627 = vmatprep.subr.bf16.mxu0 0
      %628 = vmatpush1.bf16.msra.mxu0 0
      %629 = vmatprep.mubr.bf16.mxu0 0
      %630 = vmatmul.mubr.bf16.gmra.mrb[0].mxu0 %v583
      %v631 = vpop.f32.mrb[0].mxu0
      %v632 = vadd.f32 0.0, %v631
      %v633 = vpop.f32.mrb[0].mxu0
      %v634 = vpop.f32.mrb[0].mxu0
      %v635 = vadd.f32 0.0, %v634
      %v636 = vpop.f32.mrb[0].mxu0
      %637 = vmatprep.mubr.bf16.mxu0 0
      %638 = vmatmul.mubr.bf16.gmra.mrb[0].mxu0 %v586
      %v639 = vpop.f32.mrb[0].mxu0
      %v640 = vadd.f32 0.0, %v639
      %v641 = vpop.f32.mrb[0].mxu0
      %v642 = vpop.f32.mrb[0].mxu0
      %v643 = vadd.f32 0.0, %v642
      %v644 = vpop.f32.mrb[0].mxu0
      %645 = vmatprep.mubr.bf16.mxu0 0
      %646 = vmatmul.mubr.bf16.gmra.mrb[0].mxu0 %v589
      %v647 = vpop.f32.mrb[0].mxu0
      %v648 = vadd.f32 0.0, %v647
      %v649 = vpop.f32.mrb[0].mxu0
      %v650 = vpop.f32.mrb[0].mxu0
      %v651 = vadd.f32 0.0, %v650
      %v652 = vpop.f32.mrb[0].mxu0
      %653 = vmatprep.mubr.bf16.mxu0 0
      %654 = vmatmul.mubr.bf16.gmra.mrb[0].mxu0 %v592
      %v655 = vpop.f32.mrb[0].mxu0
      %v656 = vadd.f32 0.0, %v655
      %v657 = vpop.f32.mrb[0].mxu0
      %v658 = vpop.f32.mrb[0].mxu0
      %v659 = vadd.f32 0.0, %v658
      %v660 = vpop.f32.mrb[0].mxu0
      %661 = vdwg.mxu0
      %v662 = vadd.f32 %v559, %v632
      %v663 = vadd.f32 %v560, %v635
      %v664 = vadd.f32 %v561, %v640
      %v665 = vadd.f32 %v562, %v643
      %v666 = vadd.f32 %v563, %v648
      %v667 = vadd.f32 %v564, %v651
      %v668 = vadd.f32 %v565, %v656
      %v669 = vadd.f32 %v566, %v659
      %v670 = vld [vmem:[%s464 + $0x1] sm:$0xff]
      %v671 = vld [vmem:[%s464 + $0x21] sm:$0xff]
      %v672 = vld [vmem:[%s464 + $0x41] sm:$0xff]
      %v673 = vld [vmem:[%s464 + $0x61] sm:$0xff]
      %v674 = vld [vmem:[%s464 + $0x81] sm:$0xff]
      %v675 = vld [vmem:[%s464 + $0xa1] sm:$0xff]
      %v676 = vld [vmem:[%s464 + $0xc1] sm:$0xff]
      %v677 = vld [vmem:[%s464 + $0xe1] sm:$0xff]
      %v678 = vpack.c.bf16 %v671, %v670
      %v679 = vpack.c.bf16 %v673, %v672
      %v680 = vpack.c.bf16 %v675, %v674
      %v681 = vpack.c.bf16 %v677, %v676
      %s682 = scalar_lea.vmem %s1, 10
      %v683 = vld [vmem:[%s682] sm:$0x3]
      %v685 = vsel %vm200, %v678, 0
      %v688 = vsel %vm200, %v679, 0
      %v691 = vsel %vm200, %v680, 0
      %v694 = vsel %vm200, %v681, 0
      %v697 = vsel %vm213, %v683, 0
      %699 = vmatprep.subr.bf16.mxu0 0
      %700 = vmatpush1.bf16.msra.mxu0 %v697
      %701 = vmatprep.subr.bf16.mxu0 0
      %702 = vmatpush1.bf16.msra.mxu0 0
      %703 = vmatprep.subr.bf16.mxu0 0
      %704 = vmatpush1.bf16.msra.mxu0 0
      %705 = vmatprep.subr.bf16.mxu0 0
      %706 = vmatpush1.bf16.msra.mxu0 0
      %707 = vmatprep.subr.bf16.mxu0 0
      %708 = vmatpush1.bf16.msra.mxu0 0
      %709 = vmatprep.subr.bf16.mxu0 0
      %710 = vmatpush1.bf16.msra.mxu0 0
      %711 = vmatprep.subr.bf16.mxu0 0
      %712 = vmatpush1.bf16.msra.mxu0 0
      %713 = vmatprep.subr.bf16.mxu0 0
      %714 = vmatpush1.bf16.msra.mxu0 0
      %715 = vmatprep.subr.bf16.mxu0 0
      %716 = vmatpush1.bf16.msra.mxu0 0
      %717 = vmatprep.subr.bf16.mxu0 0
      %718 = vmatpush1.bf16.msra.mxu0 0
      %719 = vmatprep.subr.bf16.mxu0 0
      %720 = vmatpush1.bf16.msra.mxu0 0
      %721 = vmatprep.subr.bf16.mxu0 0
      %722 = vmatpush1.bf16.msra.mxu0 0
      %723 = vmatprep.subr.bf16.mxu0 0
      %724 = vmatpush1.bf16.msra.mxu0 0
      %725 = vmatprep.subr.bf16.mxu0 0
      %726 = vmatpush1.bf16.msra.mxu0 0
      %727 = vmatprep.subr.bf16.mxu0 0
      %728 = vmatpush1.bf16.msra.mxu0 0
      %729 = vmatprep.subr.bf16.mxu0 0
      %730 = vmatpush1.bf16.msra.mxu0 0
      %731 = vmatprep.mubr.bf16.mxu0 0
      %732 = vmatmul.mubr.bf16.gmra.mrb[0].mxu0 %v685
      %v733 = vpop.f32.mrb[0].mxu0
      %v734 = vadd.f32 0.0, %v733
      %v735 = vpop.f32.mrb[0].mxu0
      %v736 = vpop.f32.mrb[0].mxu0
      %v737 = vadd.f32 0.0, %v736
      %v738 = vpop.f32.mrb[0].mxu0
      %739 = vmatprep.mubr.bf16.mxu0 0
      %740 = vmatmul.mubr.bf16.gmra.mrb[0].mxu0 %v688
      %v741 = vpop.f32.mrb[0].mxu0
      %v742 = vadd.f32 0.0, %v741
      %v743 = vpop.f32.mrb[0].mxu0
      %v744 = vpop.f32.mrb[0].mxu0
      %v745 = vadd.f32 0.0, %v744
      %v746 = vpop.f32.mrb[0].mxu0
      %747 = vmatprep.mubr.bf16.mxu0 0
      %748 = vmatmul.mubr.bf16.gmra.mrb[0].mxu0 %v691
      %v749 = vpop.f32.mrb[0].mxu0
      %v750 = vadd.f32 0.0, %v749
      %v751 = vpop.f32.mrb[0].mxu0
      %v752 = vpop.f32.mrb[0].mxu0
      %v753 = vadd.f32 0.0, %v752
      %v754 = vpop.f32.mrb[0].mxu0
      %755 = vmatprep.mubr.bf16.mxu0 0
      %756 = vmatmul.mubr.bf16.gmra.mrb[0].mxu0 %v694
      %v757 = vpop.f32.mrb[0].mxu0
      %v758 = vadd.f32 0.0, %v757
      %v759 = vpop.f32.mrb[0].mxu0
      %v760 = vpop.f32.mrb[0].mxu0
      %v761 = vadd.f32 0.0, %v760
      %v762 = vpop.f32.mrb[0].mxu0
      %763 = vdwg.mxu0
      %v764 = vadd.f32 %v662, %v734
      %v765 = vadd.f32 %v663, %v737
      %v766 = vadd.f32 %v664, %v742
      %v767 = vadd.f32 %v665, %v745
      %v768 = vadd.f32 %v666, %v750
      %v769 = vadd.f32 %v667, %v753
      %v770 = vadd.f32 %v668, %v758
      %v771 = vadd.f32 %v669, %v761
      %s772 = scalar_lea.vmem %s165, 32
      %v773 = vld [vmem:[%s772] sm:$0xff]
      %v774 = vld [vmem:[%s772 + $0x20] sm:$0xff]
      %v775 = vld [vmem:[%s772 + $0x40] sm:$0xff]
      %v776 = vld [vmem:[%s772 + $0x60] sm:$0xff]
      %v777 = vld [vmem:[%s772 + $0x80] sm:$0xff]
      %v778 = vld [vmem:[%s772 + $0xa0] sm:$0xff]
      %v779 = vld [vmem:[%s772 + $0xc0] sm:$0xff]
      %v780 = vld [vmem:[%s772 + $0xe0] sm:$0xff]
      %v781 = vpack.c.bf16 %v774, %v773
      %v782 = vpack.c.bf16 %v776, %v775
      %v783 = vpack.c.bf16 %v778, %v777
      %v784 = vpack.c.bf16 %v780, %v779
      %s785 = scalar_lea.vmem %s1, 12
      %v786 = vld [vmem:[%s785] sm:$0x3]
      %v788 = vsel %vm200, %v781, 0
      %v791 = vsel %vm200, %v782, 0
      %v794 = vsel %vm200, %v783, 0
      %v797 = vsel %vm200, %v784, 0
      %v800 = vsel %vm213, %v786, 0
      %802 = vmatprep.subr.bf16.mxu0 0
      %803 = vmatpush1.bf16.msra.mxu0 %v800
      %804 = vmatprep.subr.bf16.mxu0 0
      %805 = vmatpush1.bf16.msra.mxu0 0
      %806 = vmatprep.subr.bf16.mxu0 0
      %807 = vmatpush1.bf16.msra.mxu0 0
      %808 = vmatprep.subr.bf16.mxu0 0
      %809 = vmatpush1.bf16.msra.mxu0 0
      %810 = vmatprep.subr.bf16.mxu0 0
      %811 = vmatpush1.bf16.msra.mxu0 0
      %812 = vmatprep.subr.bf16.mxu0 0
      %813 = vmatpush1.bf16.msra.mxu0 0
      %814 = vmatprep.subr.bf16.mxu0 0
      %815 = vmatpush1.bf16.msra.mxu0 0
      %816 = vmatprep.subr.bf16.mxu0 0
      %817 = vmatpush1.bf16.msra.mxu0 0
      %818 = vmatprep.subr.bf16.mxu0 0
      %819 = vmatpush1.bf16.msra.mxu0 0
      %820 = vmatprep.subr.bf16.mxu0 0
      %821 = vmatpush1.bf16.msra.mxu0 0
      %822 = vmatprep.subr.bf16.mxu0 0
      %823 = vmatpush1.bf16.msra.mxu0 0
      %824 = vmatprep.subr.bf16.mxu0 0
      %825 = vmatpush1.bf16.msra.mxu0 0
      %826 = vmatprep.subr.bf16.mxu0 0
      %827 = vmatpush1.bf16.msra.mxu0 0
      %828 = vmatprep.subr.bf16.mxu0 0
      %829 = vmatpush1.bf16.msra.mxu0 0
      %830 = vmatprep.subr.bf16.mxu0 0
      %831 = vmatpush1.bf16.msra.mxu0 0
      %832 = vmatprep.subr.bf16.mxu0 0
      %833 = vmatpush1.bf16.msra.mxu0 0
      %834 = vmatprep.mubr.bf16.mxu0 0
      %835 = vmatmul.mubr.bf16.gmra.mrb[0].mxu0 %v788
      %v836 = vpop.f32.mrb[0].mxu0
      %v837 = vadd.f32 0.0, %v836
      %v838 = vpop.f32.mrb[0].mxu0
      %v839 = vpop.f32.mrb[0].mxu0
      %v840 = vadd.f32 0.0, %v839
      %v841 = vpop.f32.mrb[0].mxu0
      %842 = vmatprep.mubr.bf16.mxu0 0
      %843 = vmatmul.mubr.bf16.gmra.mrb[0].mxu0 %v791
      %v844 = vpop.f32.mrb[0].mxu0
      %v845 = vadd.f32 0.0, %v844
      %v846 = vpop.f32.mrb[0].mxu0
      %v847 = vpop.f32.mrb[0].mxu0
      %v848 = vadd.f32 0.0, %v847
      %v849 = vpop.f32.mrb[0].mxu0
      %850 = vmatprep.mubr.bf16.mxu0 0
      %851 = vmatmul.mubr.bf16.gmra.mrb[0].mxu0 %v794
      %v852 = vpop.f32.mrb[0].mxu0
      %v853 = vadd.f32 0.0, %v852
      %v854 = vpop.f32.mrb[0].mxu0
      %v855 = vpop.f32.mrb[0].mxu0
      %v856 = vadd.f32 0.0, %v855
      %v857 = vpop.f32.mrb[0].mxu0
      %858 = vmatprep.mubr.bf16.mxu0 0
      %859 = vmatmul.mubr.bf16.gmra.mrb[0].mxu0 %v797
      %v860 = vpop.f32.mrb[0].mxu0
      %v861 = vadd.f32 0.0, %v860
      %v862 = vpop.f32.mrb[0].mxu0
      %v863 = vpop.f32.mrb[0].mxu0
      %v864 = vadd.f32 0.0, %v863
      %v865 = vpop.f32.mrb[0].mxu0
      %866 = vdwg.mxu0
      %v867 = vadd.f32 %v764, %v837
      %v868 = vadd.f32 %v765, %v840
      %v869 = vadd.f32 %v766, %v845
      %v870 = vadd.f32 %v767, %v848
      %v871 = vadd.f32 %v768, %v853
      %v872 = vadd.f32 %v769, %v856
      %v873 = vadd.f32 %v770, %v861
      %v874 = vadd.f32 %v771, %v864
      %s875 = scalar_lea.vmem %s165, 48
      %v876 = vld [vmem:[%s875] sm:$0xff]
      %v877 = vld [vmem:[%s875 + $0x20] sm:$0xff]
      %v878 = vld [vmem:[%s875 + $0x40] sm:$0xff]
      %v879 = vld [vmem:[%s875 + $0x60] sm:$0xff]
      %v880 = vld [vmem:[%s875 + $0x80] sm:$0xff]
      %v881 = vld [vmem:[%s875 + $0xa0] sm:$0xff]
      %v882 = vld [vmem:[%s875 + $0xc0] sm:$0xff]
      %v883 = vld [vmem:[%s875 + $0xe0] sm:$0xff]
      %v884 = vpack.c.bf16 %v877, %v876
      %v885 = vpack.c.bf16 %v879, %v878
      %v886 = vpack.c.bf16 %v881, %v880
      %v887 = vpack.c.bf16 %v883, %v882
      %s888 = scalar_lea.vmem %s1, 14
      %v889 = vld [vmem:[%s888] sm:$0x3]
      %v891 = vsel %vm200, %v884, 0
      %v894 = vsel %vm200, %v885, 0
      %v897 = vsel %vm200, %v886, 0
      %v900 = vsel %vm200, %v887, 0
      %v903 = vsel %vm213, %v889, 0
      %905 = vmatprep.subr.bf16.mxu0 0
      %906 = vmatpush1.bf16.msra.mxu0 %v903
      %907 = vmatprep.subr.bf16.mxu0 0
      %908 = vmatpush1.bf16.msra.mxu0 0
      %909 = vmatprep.subr.bf16.mxu0 0
      %910 = vmatpush1.bf16.msra.mxu0 0
      %911 = vmatprep.subr.bf16.mxu0 0
      %912 = vmatpush1.bf16.msra.mxu0 0
      %913 = vmatprep.subr.bf16.mxu0 0
      %914 = vmatpush1.bf16.msra.mxu0 0
      %915 = vmatprep.subr.bf16.mxu0 0
      %916 = vmatpush1.bf16.msra.mxu0 0
      %917 = vmatprep.subr.bf16.mxu0 0
      %918 = vmatpush1.bf16.msra.mxu0 0
      %919 = vmatprep.subr.bf16.mxu0 0
      %920 = vmatpush1.bf16.msra.mxu0 0
      %921 = vmatprep.subr.bf16.mxu0 0
      %922 = vmatpush1.bf16.msra.mxu0 0
      %923 = vmatprep.subr.bf16.mxu0 0
      %924 = vmatpush1.bf16.msra.mxu0 0
      %925 = vmatprep.subr.bf16.mxu0 0
      %926 = vmatpush1.bf16.msra.mxu0 0
      %927 = vmatprep.subr.bf16.mxu0 0
      %928 = vmatpush1.bf16.msra.mxu0 0
      %929 = vmatprep.subr.bf16.mxu0 0
      %930 = vmatpush1.bf16.msra.mxu0 0
      %931 = vmatprep.subr.bf16.mxu0 0
      %932 = vmatpush1.bf16.msra.mxu0 0
      %933 = vmatprep.subr.bf16.mxu0 0
      %934 = vmatpush1.bf16.msra.mxu0 0
      %935 = vmatprep.subr.bf16.mxu0 0
      %936 = vmatpush1.bf16.msra.mxu0 0
      %937 = vmatprep.mubr.bf16.mxu0 0
      %938 = vmatmul.mubr.bf16.gmra.mrb[0].mxu0 %v891
      %v939 = vpop.f32.mrb[0].mxu0
      %v940 = vadd.f32 0.0, %v939
      %v941 = vpop.f32.mrb[0].mxu0
      %v942 = vpop.f32.mrb[0].mxu0
      %v943 = vadd.f32 0.0, %v942
      %v944 = vpop.f32.mrb[0].mxu0
      %945 = vmatprep.mubr.bf16.mxu0 0
      %946 = vmatmul.mubr.bf16.gmra.mrb[0].mxu0 %v894
      %v947 = vpop.f32.mrb[0].mxu0
      %v948 = vadd.f32 0.0, %v947
      %v949 = vpop.f32.mrb[0].mxu0
      %v950 = vpop.f32.mrb[0].mxu0
      %v951 = vadd.f32 0.0, %v950
      %v952 = vpop.f32.mrb[0].mxu0
      %953 = vmatprep.mubr.bf16.mxu0 0
      %954 = vmatmul.mubr.bf16.gmra.mrb[0].mxu0 %v897
      %v955 = vpop.f32.mrb[0].mxu0
      %v956 = vadd.f32 0.0, %v955
      %v957 = vpop.f32.mrb[0].mxu0
      %v958 = vpop.f32.mrb[0].mxu0
      %v959 = vadd.f32 0.0, %v958
      %v960 = vpop.f32.mrb[0].mxu0
      %961 = vmatprep.mubr.bf16.mxu0 0
      %962 = vmatmul.mubr.bf16.gmra.mrb[0].mxu0 %v900
      %v963 = vpop.f32.mrb[0].mxu0
      %v964 = vadd.f32 0.0, %v963
      %v965 = vpop.f32.mrb[0].mxu0
      %v966 = vpop.f32.mrb[0].mxu0
      %v967 = vadd.f32 0.0, %v966
      %v968 = vpop.f32.mrb[0].mxu0
      %969 = vdwg.mxu0
      %v970 = vadd.f32 %v867, %v940
      %v971 = vadd.f32 %v868, %v943
      %v972 = vadd.f32 %v869, %v948
      %v973 = vadd.f32 %v870, %v951
      %v974 = vadd.f32 %v871, %v956
      %v975 = vadd.f32 %v872, %v959
      %v976 = vadd.f32 %v873, %v964
      %v977 = vadd.f32 %v874, %v967
      %v978 = vld [vmem:[%s772 + $0x1] sm:$0xff]
      %v979 = vld [vmem:[%s772 + $0x21] sm:$0xff]
      %v980 = vld [vmem:[%s772 + $0x41] sm:$0xff]
      %v981 = vld [vmem:[%s772 + $0x61] sm:$0xff]
      %v982 = vld [vmem:[%s772 + $0x81] sm:$0xff]
      %v983 = vld [vmem:[%s772 + $0xa1] sm:$0xff]
      %v984 = vld [vmem:[%s772 + $0xc1] sm:$0xff]
      %v985 = vld [vmem:[%s772 + $0xe1] sm:$0xff]
      %v986 = vpack.c.bf16 %v979, %v978
      %v987 = vpack.c.bf16 %v981, %v980
      %v988 = vpack.c.bf16 %v983, %v982
      %v989 = vpack.c.bf16 %v985, %v984
      %s990 = scalar_lea.vmem %s1, 16
      %v991 = vld [vmem:[%s990] sm:$0x3]
      %v993 = vsel %vm200, %v986, 0
      %v996 = vsel %vm200, %v987, 0
      %v999 = vsel %vm200, %v988, 0
      %v1002 = vsel %vm200, %v989, 0
      %v1005 = vsel %vm213, %v991, 0
      %1007 = vmatprep.subr.bf16.mxu0 0
      %1008 = vmatpush1.bf16.msra.mxu0 %v1005
      %1009 = vmatprep.subr.bf16.mxu0 0
      %1010 = vmatpush1.bf16.msra.mxu0 0
      %1011 = vmatprep.subr.bf16.mxu0 0
      %1012 = vmatpush1.bf16.msra.mxu0 0
      %1013 = vmatprep.subr.bf16.mxu0 0
      %1014 = vmatpush1.bf16.msra.mxu0 0
      %1015 = vmatprep.subr.bf16.mxu0 0
      %1016 = vmatpush1.bf16.msra.mxu0 0
      %1017 = vmatprep.subr.bf16.mxu0 0
      %1018 = vmatpush1.bf16.msra.mxu0 0
      %1019 = vmatprep.subr.bf16.mxu0 0
      %1020 = vmatpush1.bf16.msra.mxu0 0
      %1021 = vmatprep.subr.bf16.mxu0 0
      %1022 = vmatpush1.bf16.msra.mxu0 0
      %1023 = vmatprep.subr.bf16.mxu0 0
      %1024 = vmatpush1.bf16.msra.mxu0 0
      %1025 = vmatprep.subr.bf16.mxu0 0
      %1026 = vmatpush1.bf16.msra.mxu0 0
      %1027 = vmatprep.subr.bf16.mxu0 0
      %1028 = vmatpush1.bf16.msra.mxu0 0
      %1029 = vmatprep.subr.bf16.mxu0 0
      %1030 = vmatpush1.bf16.msra.mxu0 0
      %1031 = vmatprep.subr.bf16.mxu0 0
      %1032 = vmatpush1.bf16.msra.mxu0 0
      %1033 = vmatprep.subr.bf16.mxu0 0
      %1034 = vmatpush1.bf16.msra.mxu0 0
      %1035 = vmatprep.subr.bf16.mxu0 0
      %1036 = vmatpush1.bf16.msra.mxu0 0
      %1037 = vmatprep.subr.bf16.mxu0 0
      %1038 = vmatpush1.bf16.msra.mxu0 0
      %1039 = vmatprep.mubr.bf16.mxu0 0
      %1040 = vmatmul.mubr.bf16.gmra.mrb[0].mxu0 %v993
      %v1041 = vpop.f32.mrb[0].mxu0
      %v1042 = vadd.f32 0.0, %v1041
      %v1043 = vpop.f32.mrb[0].mxu0
      %v1044 = vpop.f32.mrb[0].mxu0
      %v1045 = vadd.f32 0.0, %v1044
      %v1046 = vpop.f32.mrb[0].mxu0
      %1047 = vmatprep.mubr.bf16.mxu0 0
      %1048 = vmatmul.mubr.bf16.gmra.mrb[0].mxu0 %v996
      %v1049 = vpop.f32.mrb[0].mxu0
      %v1050 = vadd.f32 0.0, %v1049
      %v1051 = vpop.f32.mrb[0].mxu0
      %v1052 = vpop.f32.mrb[0].mxu0
      %v1053 = vadd.f32 0.0, %v1052
      %v1054 = vpop.f32.mrb[0].mxu0
      %1055 = vmatprep.mubr.bf16.mxu0 0
      %1056 = vmatmul.mubr.bf16.gmra.mrb[0].mxu0 %v999
      %v1057 = vpop.f32.mrb[0].mxu0
      %v1058 = vadd.f32 0.0, %v1057
      %v1059 = vpop.f32.mrb[0].mxu0
      %v1060 = vpop.f32.mrb[0].mxu0
      %v1061 = vadd.f32 0.0, %v1060
      %v1062 = vpop.f32.mrb[0].mxu0
      %1063 = vmatprep.mubr.bf16.mxu0 0
      %1064 = vmatmul.mubr.bf16.gmra.mrb[0].mxu0 %v1002
      %v1065 = vpop.f32.mrb[0].mxu0
      %v1066 = vadd.f32 0.0, %v1065
      %v1067 = vpop.f32.mrb[0].mxu0
      %v1068 = vpop.f32.mrb[0].mxu0
      %v1069 = vadd.f32 0.0, %v1068
      %v1070 = vpop.f32.mrb[0].mxu0
      %1071 = vdwg.mxu0
      %v1072 = vadd.f32 %v970, %v1042
      %v1073 = vadd.f32 %v971, %v1045
      %v1074 = vadd.f32 %v972, %v1050
      %v1075 = vadd.f32 %v973, %v1053
      %v1076 = vadd.f32 %v974, %v1058
      %v1077 = vadd.f32 %v975, %v1061
      %v1078 = vadd.f32 %v976, %v1066
      %v1079 = vadd.f32 %v977, %v1069
      %v1080 = vld [vmem:[%s2] sm:$0x1]
      %v1082 = vlaneseq
      %v1083 = vshrl.u32 %v1082, 7
      %v1084 = vsub.s32 0, %v1083
      %v1085 = vrot.slane %v1080, %v1084
      %v1087 = vadd.f32 %v1072, %v1085
      %v1088 = vadd.f32 %v1073, %v1085
      %v1089 = vadd.f32 %v1074, %v1085
      %v1090 = vadd.f32 %v1075, %v1085
      %v1091 = vadd.f32 %v1076, %v1085
      %v1092 = vadd.f32 %v1077, %v1085
      %v1093 = vadd.f32 %v1078, %v1085
      %v1094 = vadd.f32 %v1079, %v1085
      %1095 = vst.msk [vmem:[%s170] sm:$0xff] %vm200, %v1087
      %1096 = vst.msk [vmem:[%s170 + $0x8] sm:$0xff] %vm200, %v1088
      %1097 = vst.msk [vmem:[%s170 + $0x10] sm:$0xff] %vm200, %v1089
      %1098 = vst.msk [vmem:[%s170 + $0x18] sm:$0xff] %vm200, %v1090
      %1099 = vst.msk [vmem:[%s170 + $0x20] sm:$0xff] %vm200, %v1091
      %1100 = vst.msk [vmem:[%s170 + $0x28] sm:$0xff] %vm200, %v1092
      %1101 = vst.msk [vmem:[%s170 + $0x30] sm:$0xff] %vm200, %v1093
      %1102 = vst.msk [vmem:[%s170 + $0x38] sm:$0xff] %vm200, %v1094
      %p1103 = scmp.lt.s32.totalorder %s14, 1
      %s1104 = scalar_select %p1103, %s14, 1
      %s1105 = smul.addr %s1104, 8
      %s1106 = smul.addr %s1105, 8
      %s1107 = scalar_lea.vmem %s3, %s1106
      // Predicated region
      $region33: #{downsample_forward.1} parent=31 // pred_check
        %p1108 = pneg %p100
      $region34: #{downsample_forward.1} parent=31 // pred_check_branch
        %1110 = sbr.rel (%p1108) target = $region36
      $region35: #{downsample_forward.1} parent=31 // pred_region
        _
      $region36: #{downsample_forward.1} parent=31 // pred_fallthru
        _
    $region32: #{downsample_forward.1} parent=5 // pred_fallthru
      _
    %p1111 = scmp.le.s32.totalorder 2, %s9
    // Predicated region
    $region37: #{downsample_forward.1} parent=5 // pred_check
      %p1112 = pneg %p1111
    $region38: #{downsample_forward.1} parent=5 // pred_check_branch
      %1114 = sbr.rel (%p1112) target = $region40
    $region39: #{downsample_forward.1} parent=5 // pred_region
      %s1115 = ssub.s32 %s9, 2
      // Predicated region
      $region41: #{downsample_forward.1} parent=39 // pred_check
        %p1116 = pneg %p106
      $region42: #{downsample_forward.1} parent=39 // pred_check_branch
        %1118 = sbr.rel (%p1116) target = $region44
      $region43: #{downsample_forward.1} parent=39 // pred_region
        %p1119 = scmp.lt.s32.totalorder %s15, 1
        %s1120 = scalar_select %p1119, %s15, 1
        %s1121 = smul.addr %s1120, 8
        %s1122 = smul.addr %s1121, 8
        %s1123 = scalar_lea.vmem %s3, %s1122
      $region44: #{downsample_forward.1} parent=39 // pred_fallthru
        _
    $region40: #{downsample_forward.1} parent=5 // pred_fallthru
      _
  $region6: #{downsample_forward.1} parent=0 // loop_footer
    %s13 = sadd.s32 1, %s9
  $region7: #{downsample_forward.1} parent=0 // loop_footer_branch
    %8 = sbr.rel target = $region3
  $region8: #{downsample_forward.1} parent=0 // loop_exit
    _

</llo_original>
